<compile_context>
chip_gen: v5e
topology: v5e:2x2
jax: 0.10.0
libtpu: 0.0.40
codegen_flags: <defaults>
</compile_context>

<pallas_src>
import functools

import jax
import jax.numpy as jnp
from jax.experimental import pallas as pl
from jax.experimental.pallas import tpu as pltpu

LATENT_DIM = 100
NUM_CLASSES = 10
AUG_DIM = LATENT_DIM + NUM_CLASSES   # 110: z lanes + one-hot label lanes
HIDDEN = 256
OUT_DIM = 784                        # 28 * 28 (kernel writes this width directly)
K_PAD = 128                          # input lanes padded to one full lane group
MAX_TILE_B = 2048                    # ~9 MiB/tile post-diet; fits all generations
MIN_SPLIT_B = 512                    # split into >=2 tiles above this (v7x 2 TCs)


def _cdiv(a, b):
    return (a + b - 1) // b


def _round_up(x, m):
    return _cdiv(x, m) * m


def _use_bf16_tanh():
    """bf16 EUP exists on v6e/v7x; keep f32 tanh on v5e/older (safe default)."""
    try:
        kind = jax.devices()[0].device_kind.lower()
    except Exception:
        return False
    return any(tag in kind for tag in ("v6", "v7", "tpu7"))


def _generator_mlp_kernel(z_ref, w1_ref, w2_ref, b2_ref, o_ref, *, bf16_tanh):
    # z:  (TB, 128) bf16   (lanes 0..99 = z, 100..109 = one_hot(label), rest 0)
    # w1: (128, 256) bf16  (rows 100..109 carry embed @ W1[100:] + b1)
    # w2: (256, 784) bf16   b2: (1, 784) f32   o: (TB, 784) bf16
    h = jnp.dot(z_ref[...], w1_ref[...], preferred_element_type=jnp.float32)
    h = jnp.maximum(h, 0.0)                                        # ReLU in f32
    o = jnp.dot(h.astype(jnp.bfloat16), w2_ref[...],
                preferred_element_type=jnp.float32) + b2_ref[...]
    if bf16_tanh:
        o_ref[...] = jnp.tanh(o.astype(jnp.bfloat16))              # bf16 EUP path
    else:
        o_ref[...] = jnp.tanh(o).astype(o_ref.dtype)               # f32 EUP path


def generator_mlp(z_pad, w1z, w2b, b2, tile_b):
    """z_pad: (Bp, 128) bf16 -> (Bp, 784) bf16."""
    Bp = z_pad.shape[0]
    assert Bp % tile_b == 0
    grid = (Bp // tile_b,)

    flops = 2 * Bp * (K_PAD * HIDDEN + HIDDEN * OUT_DIM)
    bytes_accessed = (z_pad.size * 2 + w1z.size * 2 + w2b.size * 2
                      + b2.size * 4 + Bp * OUT_DIM * 2)

    kernel = functools.partial(_generator_mlp_kernel, bf16_tanh=_use_bf16_tanh())

    return pl.pallas_call(
        kernel,
        out_shape=jax.ShapeDtypeStruct((Bp, OUT_DIM), jnp.bfloat16),
        grid=grid,
        in_specs=[
            pl.BlockSpec((tile_b, K_PAD), lambda i: (i, 0)),    # z tile (streamed)
            pl.BlockSpec((K_PAD, HIDDEN), lambda i: (0, 0)),    # W1+labels (resident)
            pl.BlockSpec((HIDDEN, OUT_DIM), lambda i: (0, 0)),  # W2 (resident)
            pl.BlockSpec((1, OUT_DIM), lambda i: (0, 0)),       # b2 (resident)
        ],
        out_specs=pl.BlockSpec((tile_b, OUT_DIM), lambda i: (i, 0)),
        compiler_params=pltpu.CompilerParams(
            dimension_semantics=("parallel",),
            vmem_limit_bytes=32 * 1024 * 1024,   # ample headroom under v7x 64 MiB
        ),
        cost_estimate=pl.CostEstimate(
            flops=flops,
            transcendentals=Bp * OUT_DIM,
            bytes_accessed=bytes_accessed,
        ),
    )(z_pad, w1z, w2b, b2)


def init_generator_params(key):
    """Deterministic parameter init (shapes match the PyTorch module)."""
    k_emb, k_w1, k_b1, k_w2, k_b2 = jax.random.split(key, 5)
    # nn.Embedding(10, 100): N(0, 1)
    embed = jax.random.normal(k_emb, (NUM_CLASSES, LATENT_DIM), dtype=jnp.float32)
    # nn.Linear(in, out): uniform(-1/sqrt(in), 1/sqrt(in)); stored as (in, out)
    lim1 = 1.0 / jnp.sqrt(2.0 * LATENT_DIM)
    w1 = jax.random.uniform(k_w1, (2 * LATENT_DIM, HIDDEN), jnp.float32, -lim1, lim1)
    b1 = jax.random.uniform(k_b1, (1, HIDDEN), jnp.float32, -lim1, lim1)
    lim2 = 1.0 / jnp.sqrt(float(HIDDEN))
    w2 = jax.random.uniform(k_w2, (HIDDEN, OUT_DIM), jnp.float32, -lim2, lim2)
    b2 = jax.random.uniform(k_b2, (1, OUT_DIM), jnp.float32, -lim2, lim2)
    return embed, w1, b1, w2, b2


def prepare_kernel_params(params):
    """One-time transform of the PyTorch-layout params into kernel layout."""
    embed, w1, b1, w2, b2 = params
    # Fold embedding-half of the first linear + its bias into 10 extra W1 rows,
    # selected at runtime by the one-hot lanes written into z's padding.
    label_table = embed @ w1[LATENT_DIM:, :] + b1                 # (10, 256)
    w1_aug = jnp.concatenate([w1[:LATENT_DIM, :], label_table], axis=0)  # (110, 256)
    w1z = jnp.zeros((K_PAD, HIDDEN), jnp.float32).at[:AUG_DIM].set(
        w1_aug).astype(jnp.bfloat16)                              # (128, 256) bf16
    w2b = w2.astype(jnp.bfloat16)                                 # (256, 784) bf16
    b2f = b2.astype(jnp.float32)                                  # (1, 784) f32
    return w1z, w2b, b2f


def _choose_tiling(B):
    """n_tiles / tile_b / padded batch: caps padding at 8*n rows and keeps
    >= 2 grid iterations for mid/large batches (both v7x TensorCores busy)."""
    n = max(_cdiv(B, MAX_TILE_B), 2 if B >= MIN_SPLIT_B else 1)
    tile_b = _round_up(_cdiv(B, n), 8)
    return n * tile_b, tile_b


def generator_forward(kernel_params, z, labels):
    """z: (B, 100) float32, labels: (B,) int32 -> (B, 1, 28, 28) bfloat16."""
    w1z, w2b, b2 = kernel_params
    B = z.shape[0]
    Bp, tile_b = _choose_tiling(B)

    # One-hot labels go into z's padding lanes 100..109; lanes 110..127 stay 0.
    onehot = jax.nn.one_hot(labels, NUM_CLASSES, dtype=z.dtype)   # (B, 10)
    z_aug = jnp.concatenate([z, onehot], axis=1)                  # (B, 110)
    z_pad = jnp.pad(z_aug, ((0, Bp - B), (0, K_PAD - AUG_DIM))).astype(jnp.bfloat16)

    out = generator_mlp(z_pad, w1z, w2b, b2, tile_b)              # (Bp, 784) bf16
    return out[:B].reshape(-1, 1, 28, 28)                         # NCHW


if __name__ == "__main__":
    key = jax.random.PRNGKey(0)
    k_params, k_z, k_lbl = jax.random.split(key, 3)

    params = init_generator_params(k_params)
    kernel_params = prepare_kernel_params(params)

    B = 8
    z = jax.random.normal(k_z, (B, LATENT_DIM), dtype=jnp.float32)
    labels = jax.random.randint(k_lbl, (B,), 0, NUM_CLASSES, dtype=jnp.int32)

    out = generator_forward(kernel_params, z, labels)
    out = jax.block_until_ready(out)

    # Reference check against plain-JAX f32 math (original module semantics).
    embed, w1, b1, w2, b2 = params
    x_ref = jnp.concatenate([z, jnp.take(embed, labels, axis=0)], axis=1)
    h_ref = jnp.maximum(x_ref @ w1 + b1, 0.0)
    ref = jnp.tanh(h_ref @ w2 + b2).reshape(-1, 1, 28, 28)

    assert out.shape == (B, 1, 28, 28), out.shape
    assert out.dtype == jnp.bfloat16, out.dtype
    # bf16 matmul inputs/output with f32 accumulation -> loosened tolerance.
    err = float(jnp.max(jnp.abs(out.astype(jnp.float32) - ref)))
    assert err < 2e-2, err

    print("KERNEL_OK")
</pallas_src>

<mosaic_0001>
module attributes {stable_mosaic.version = 11 : i64} {
  func.func @_generator_mlp_kernel(%arg0: i32, %arg1: memref<8x128xbf16, #tpu.memory_space<vmem>>, %arg2: memref<128x256xbf16, #tpu.memory_space<vmem>>, %arg3: memref<256x784xbf16, #tpu.memory_space<vmem>>, %arg4: memref<1x784xf32, #tpu.memory_space<vmem>>, %arg5: memref<8x784xbf16, #tpu.memory_space<vmem>>) attributes {dimension_semantics = [#tpu.dimension_semantics<parallel>], iteration_bounds = array<i64: 1>, scalar_prefetch = 0 : i64, scratch_operands = 0 : i64, tpu.core_type = #tpu.core_type<tc>, window_params = [{transform_indices = @transform_0, window_bounds = array<i64: 8, 128>}, {pipeline_mode = #tpu.pipeline_mode<synchronous>, transform_indices = @transform_1, window_bounds = array<i64: 128, 256>}, {pipeline_mode = #tpu.pipeline_mode<synchronous>, transform_indices = @transform_2, window_bounds = array<i64: 256, 784>}, {pipeline_mode = #tpu.pipeline_mode<synchronous>, transform_indices = @transform_3, window_bounds = array<i64: 1, 784>}, {transform_indices = @transform_4, window_bounds = array<i64: 8, 784>}]} {
    %c0 = arith.constant 0 : index
    %c0_0 = arith.constant 0 : index
    %0 = vector.load %arg1[%c0, %c0_0] : memref<8x128xbf16, #tpu.memory_space<vmem>>, vector<8x128xbf16>
    %c0_1 = arith.constant 0 : index
    %c0_2 = arith.constant 0 : index
    %1 = vector.load %arg2[%c0_1, %c0_2] : memref<128x256xbf16, #tpu.memory_space<vmem>>, vector<128x256xbf16>
    %cst = arith.constant dense<0.000000e+00> : vector<8x256xf32>
    %2 = tpu.matmul %0, %1, %cst {dimension_numbers = #tpu.dot_dimension_numbers<[1], [0], [0], [1], [0, 0, 1, 1], [], []>} : vector<8x128xbf16>, vector<128x256xbf16>, vector<8x256xf32> -> vector<8x256xf32>
    %cst_3 = arith.constant 0.000000e+00 : f32
    %3 = vector.broadcast %cst_3 : f32 to vector<8x256xf32>
    %4 = arith.maximumf %2, %3 : vector<8x256xf32>
    %5 = arith.truncf %4 : vector<8x256xf32> to vector<8x256xbf16>
    %c0_4 = arith.constant 0 : index
    %c0_5 = arith.constant 0 : index
    %6 = vector.load %arg3[%c0_4, %c0_5] : memref<256x784xbf16, #tpu.memory_space<vmem>>, vector<256x784xbf16>
    %cst_6 = arith.constant dense<0.000000e+00> : vector<8x784xf32>
    %7 = tpu.matmul %5, %6, %cst_6 {dimension_numbers = #tpu.dot_dimension_numbers<[1], [0], [0], [1], [0, 0, 1, 1], [], []>} : vector<8x256xbf16>, vector<256x784xbf16>, vector<8x784xf32> -> vector<8x784xf32>
    %c0_7 = arith.constant 0 : index
    %c0_8 = arith.constant 0 : index
    %8 = vector.load %arg4[%c0_7, %c0_8] : memref<1x784xf32, #tpu.memory_space<vmem>>, vector<1x784xf32>
    %9 = vector.broadcast %8 : vector<1x784xf32> to vector<8x784xf32>
    %10 = arith.addf %7, %9 : vector<8x784xf32>
    %11 = math.tanh %10 : vector<8x784xf32>
    %12 = arith.truncf %11 : vector<8x784xf32> to vector<8x784xbf16>
    %c0_9 = arith.constant 0 : index
    %c0_10 = arith.constant 0 : index
    %13 = vector.load %arg5[%c0_9, %c0_10] : memref<8x784xbf16, #tpu.memory_space<vmem>>, vector<8x784xbf16>
    tpu.vector_store %arg5[%c0_9, %c0_10], %12 {strides = array<i32>} : memref<8x784xbf16, #tpu.memory_space<vmem>>, vector<8x784xbf16>,
    return
  }
  func.func @transform_0(%arg0: i32) -> (i32, i32) {
    %c0_i32 = arith.constant 0 : i32
    %c0_i32_0 = arith.constant 0 : i32
    return %arg0, %c0_i32 : i32, i32
  }
  func.func @transform_1(%arg0: i32) -> (i32, i32) {
    %c0_i32 = arith.constant 0 : i32
    %c0_i32_0 = arith.constant 0 : i32
    %c0_i32_1 = arith.constant 0 : i32
    return %c0_i32, %c0_i32_0 : i32, i32
  }
  func.func @transform_2(%arg0: i32) -> (i32, i32) {
    %c0_i32 = arith.constant 0 : i32
    %c0_i32_0 = arith.constant 0 : i32
    %c0_i32_1 = arith.constant 0 : i32
    return %c0_i32, %c0_i32_0 : i32, i32
  }
  func.func @transform_3(%arg0: i32) -> (i32, i32) {
    %c0_i32 = arith.constant 0 : i32
    %c0_i32_0 = arith.constant 0 : i32
    %c0_i32_1 = arith.constant 0 : i32
    return %c0_i32, %c0_i32_0 : i32, i32
  }
  func.func @transform_4(%arg0: i32) -> (i32, i32) {
    %c0_i32 = arith.constant 0 : i32
    %c0_i32_0 = arith.constant 0 : i32
    return %arg0, %c0_i32 : i32, i32
  }
}

</mosaic_0001>

<llo_original>
// kernel: tpu_custom_call.1
$region0: #{tpu_custom_call.1}
  #allocation0 [shape = 'u32[]', space=smem, size = 0x4, offset = 0x4, fixed_abs, tag = 'smem constant byte address 0x4 - core index']
  #allocation1 [shape = 'u32[72,128]{1,0:T(1,128)}', space=vmem, size = 0x9000, scoped, tag = 'internal scratch']
  %s0 = inlined_call_operand.vmem [shape: bf16[8,128], index: 0, kind: input, shape index: {}]
  %s1 = inlined_call_operand.vmem [shape: bf16[128,256], index: 1, kind: input, shape index: {}]
  %s2 = inlined_call_operand.vmem [shape: bf16[256,784], index: 2, kind: input, shape index: {}]
  %s3 = inlined_call_operand.vmem [shape: f32[1,784], index: 3, kind: input, shape index: {}]
  %s4 = inlined_call_operand.hbm [shape: bf16[8,784], index: 4, kind: output, shape index: {}]
  %s5 = sld [smem:[#allocation0]]
  $region26: #{tpu_custom_call.1} parent=0
    _
  %s7 = ssub.s32 1, %s5
  %s8 = scalar_select 0, %s7, %s5
  $region1: #{tpu_custom_call.1} parent=0
    #allocation2 [shape = 'u8[14336]{0}', space=vmem, size = 0x3800, scoped, tag = 'output window, operand 0, single buffered']
    #allocation3 [shape = 's32[1]{0}', space=sflag, size = 0x4, scoped, tag = 'scoped memory for tpu_custom_call.1']
    %9 = vsyncpa [#allocation3], 0
    // Predicated region
    $region2: #{tpu_custom_call.1} parent=1 // pred_check
      _
    $region3: #{tpu_custom_call.1} parent=1 // pred_check_branch
      %11 = sbr.rel (0) target = $region5
    $region4: #{tpu_custom_call.1} parent=1 // pred_region
      _
    $region5: #{tpu_custom_call.1} parent=1 // pred_fallthru
      _
    // Predicated region
    $region6: #{tpu_custom_call.1} parent=1 // pred_check
      _
    $region7: #{tpu_custom_call.1} parent=1 // pred_check_branch
      %13 = sbr.rel (0) target = $region9
    $region8: #{tpu_custom_call.1} parent=1 // pred_region
      _
    $region9: #{tpu_custom_call.1} parent=1 // pred_fallthru
      _
    // Predicated region
    $region10: #{tpu_custom_call.1} parent=1 // pred_check
      _
    $region11: #{tpu_custom_call.1} parent=1 // pred_check_branch
      %15 = sbr.rel (0) target = $region13
    $region12: #{tpu_custom_call.1} parent=1 // pred_region
      _
    $region13: #{tpu_custom_call.1} parent=1 // pred_fallthru
      _
    // Predicated region
    $region14: #{tpu_custom_call.1} parent=1 // pred_check
      _
    $region15: #{tpu_custom_call.1} parent=1 // pred_check_branch
      %17 = sbr.rel (0) target = $region17
    $region16: #{tpu_custom_call.1} parent=1 // pred_region
      _
    $region17: #{tpu_custom_call.1} parent=1 // pred_fallthru
      _
    %v18 = vld [vmem:[%s0] sm:$0xf]
    %v19 = vld [vmem:[%s1] sm:$0xff]
    %v20 = vld [vmem:[%s1 + $0x8] sm:$0xff]
    %v21 = vld [vmem:[%s1 + $0x10] sm:$0xff]
    %v22 = vld [vmem:[%s1 + $0x18] sm:$0xff]
    %v23 = vld [vmem:[%s1 + $0x20] sm:$0xff]
    %v24 = vld [vmem:[%s1 + $0x28] sm:$0xff]
    %v25 = vld [vmem:[%s1 + $0x30] sm:$0xff]
    %v26 = vld [vmem:[%s1 + $0x38] sm:$0xff]
    %v27 = vld [vmem:[%s1 + $0x40] sm:$0xff]
    %v28 = vld [vmem:[%s1 + $0x48] sm:$0xff]
    %v29 = vld [vmem:[%s1 + $0x50] sm:$0xff]
    %v30 = vld [vmem:[%s1 + $0x58] sm:$0xff]
    %v31 = vld [vmem:[%s1 + $0x60] sm:$0xff]
    %v32 = vld [vmem:[%s1 + $0x68] sm:$0xff]
    %v33 = vld [vmem:[%s1 + $0x70] sm:$0xff]
    %v34 = vld [vmem:[%s1 + $0x78] sm:$0xff]
    %v51 = vunpack.c.l.b16 %v19
    %v52 = vunpack.c.h.b16 %v19
    %v53 = vunpack.c.l.b16 %v20
    %v54 = vunpack.c.h.b16 %v20
    %v55 = vunpack.c.l.b16 %v21
    %v56 = vunpack.c.h.b16 %v21
    %v57 = vunpack.c.l.b16 %v22
    %v58 = vunpack.c.h.b16 %v22
    %v59 = vunpack.c.l.b16 %v23
    %v60 = vunpack.c.h.b16 %v23
    %v61 = vunpack.c.l.b16 %v24
    %v62 = vunpack.c.h.b16 %v24
    %v63 = vunpack.c.l.b16 %v25
    %v64 = vunpack.c.h.b16 %v25
    %v65 = vunpack.c.l.b16 %v26
    %v66 = vunpack.c.h.b16 %v26
    %v67 = vunpack.c.l.b16 %v27
    %v68 = vunpack.c.h.b16 %v27
    %v69 = vunpack.c.l.b16 %v28
    %v70 = vunpack.c.h.b16 %v28
    %v71 = vunpack.c.l.b16 %v29
    %v72 = vunpack.c.h.b16 %v29
    %v73 = vunpack.c.l.b16 %v30
    %v74 = vunpack.c.h.b16 %v30
    %v75 = vunpack.c.l.b16 %v31
    %v76 = vunpack.c.h.b16 %v31
    %v77 = vunpack.c.l.b16 %v32
    %v78 = vunpack.c.h.b16 %v32
    %v79 = vunpack.c.l.b16 %v33
    %v80 = vunpack.c.h.b16 %v33
    %v81 = vunpack.c.l.b16 %v34
    %v82 = vunpack.c.h.b16 %v34
    %v83 = vpack.c.b16 %v53, %v51
    %v84 = vpack.c.b16 %v54, %v52
    %v85 = vpack.c.b16 %v57, %v55
    %v86 = vpack.c.b16 %v58, %v56
    %v87 = vpack.c.b16 %v61, %v59
    %v88 = vpack.c.b16 %v62, %v60
    %v89 = vpack.c.b16 %v65, %v63
    %v90 = vpack.c.b16 %v66, %v64
    %v91 = vpack.c.b16 %v69, %v67
    %v92 = vpack.c.b16 %v70, %v68
    %v93 = vpack.c.b16 %v73, %v71
    %v94 = vpack.c.b16 %v74, %v72
    %v95 = vpack.c.b16 %v77, %v75
    %v96 = vpack.c.b16 %v78, %v76
    %v97 = vpack.c.b16 %v81, %v79
    %v98 = vpack.c.b16 %v82, %v80
    %115 = vmatpush.bf16.msra.mxu0 %v97
    %116 = vmatpush.bf16.msra.mxu0 %v95
    %117 = vmatpush.bf16.msra.mxu0 %v93
    %118 = vmatpush.bf16.msra.mxu0 %v91
    %119 = vmatpush.bf16.msra.mxu0 %v89
    %120 = vmatpush.bf16.msra.mxu0 %v87
    %121 = vmatpush.bf16.msra.mxu0 %v85
    %122 = vmatpush.bf16.msra.mxu0 %v83
    %123 = vmatmul.bf16.gmra.mxu0 %v18
    %v124 = vpop.f32.mrf.mxu0
    %v125 = vadd.f32 0.0, %v124
    %v126 = vpop.f32.mrf.mxu0
    %127 = vdwg.mxu0
    %128 = vmatpush.bf16.msra.mxu0 %v98
    %129 = vmatpush.bf16.msra.mxu0 %v96
    %130 = vmatpush.bf16.msra.mxu0 %v94
    %131 = vmatpush.bf16.msra.mxu0 %v92
    %132 = vmatpush.bf16.msra.mxu0 %v90
    %133 = vmatpush.bf16.msra.mxu0 %v88
    %134 = vmatpush.bf16.msra.mxu0 %v86
    %135 = vmatpush.bf16.msra.mxu0 %v84
    %136 = vmatmul.bf16.gmra.mxu0 %v18
    %v137 = vpop.f32.mrf.mxu0
    %v138 = vadd.f32 0.0, %v137
    %v139 = vpop.f32.mrf.mxu0
    %140 = vdwg.mxu0
    %v141 = vmax.f32 %v125, 0.0
    %v142 = vmax.f32 %v138, 0.0
    %v143 = vpack.c.bf16 %v141, %v141
    %v144 = vpack.c.bf16 %v142, %v142
    %v145 = vld [vmem:[%s2] sm:$0xff]
    %v146 = vld [vmem:[%s2 + $0x8] sm:$0xff]
    %v147 = vld [vmem:[%s2 + $0x10] sm:$0xff]
    %v148 = vld [vmem:[%s2 + $0x18] sm:$0xf]
    %v149 = vld [vmem:[%s2 + $0x1c] sm:$0xff]
    %v150 = vld [vmem:[%s2 + $0x24] sm:$0xff]
    %v151 = vld [vmem:[%s2 + $0x2c] sm:$0xff]
    %v152 = vld [vmem:[%s2 + $0x34] sm:$0xf]
    %v153 = vld [vmem:[%s2 + $0x38] sm:$0xff]
    %v154 = vld [vmem:[%s2 + $0x40] sm:$0xff]
    %v155 = vld [vmem:[%s2 + $0x48] sm:$0xff]
    %v156 = vld [vmem:[%s2 + $0x50] sm:$0xf]
    %v157 = vld [vmem:[%s2 + $0x54] sm:$0xff]
    %v158 = vld [vmem:[%s2 + $0x5c] sm:$0xff]
    %v159 = vld [vmem:[%s2 + $0x64] sm:$0xff]
    %v160 = vld [vmem:[%s2 + $0x6c] sm:$0xf]
    %v161 = vld [vmem:[%s2 + $0x70] sm:$0xff]
    %v162 = vld [vmem:[%s2 + $0x78] sm:$0xff]
    %v163 = vld [vmem:[%s2 + $0x80] sm:$0xff]
    %v164 = vld [vmem:[%s2 + $0x88] sm:$0xf]
    %v165 = vld [vmem:[%s2 + $0x8c] sm:$0xff]
    %v166 = vld [vmem:[%s2 + $0x94] sm:$0xff]
    %v167 = vld [vmem:[%s2 + $0x9c] sm:$0xff]
    %v168 = vld [vmem:[%s2 + $0xa4] sm:$0xf]
    %v169 = vld [vmem:[%s2 + $0xa8] sm:$0xff]
    %v170 = vld [vmem:[%s2 + $0xb0] sm:$0xff]
    %v171 = vld [vmem:[%s2 + $0xb8] sm:$0xff]
    %v172 = vld [vmem:[%s2 + $0xc0] sm:$0xf]
    %v173 = vld [vmem:[%s2 + $0xc4] sm:$0xff]
    %v174 = vld [vmem:[%s2 + $0xcc] sm:$0xff]
    %v175 = vld [vmem:[%s2 + $0xd4] sm:$0xff]
    %v176 = vld [vmem:[%s2 + $0xdc] sm:$0xf]
    %v177 = vld [vmem:[%s2 + $0xe0] sm:$0xff]
    %v178 = vld [vmem:[%s2 + $0xe8] sm:$0xff]
    %v179 = vld [vmem:[%s2 + $0xf0] sm:$0xff]
    %v180 = vld [vmem:[%s2 + $0xf8] sm:$0xf]
    %v181 = vld [vmem:[%s2 + $0xfc] sm:$0xff]
    %v182 = vld [vmem:[%s2 + $0x104] sm:$0xff]
    %v183 = vld [vmem:[%s2 + $0x10c] sm:$0xff]
    %v184 = vld [vmem:[%s2 + $0x114] sm:$0xf]
    %v185 = vld [vmem:[%s2 + $0x118] sm:$0xff]
    %v186 = vld [vmem:[%s2 + $0x120] sm:$0xff]
    %v187 = vld [vmem:[%s2 + $0x128] sm:$0xff]
    %v188 = vld [vmem:[%s2 + $0x130] sm:$0xf]
    %v189 = vld [vmem:[%s2 + $0x134] sm:$0xff]
    %v190 = vld [vmem:[%s2 + $0x13c] sm:$0xff]
    %v191 = vld [vmem:[%s2 + $0x144] sm:$0xff]
    %v192 = vld [vmem:[%s2 + $0x14c] sm:$0xf]
    %v193 = vld [vmem:[%s2 + $0x150] sm:$0xff]
    %v194 = vld [vmem:[%s2 + $0x158] sm:$0xff]
    %v195 = vld [vmem:[%s2 + $0x160] sm:$0xff]
    %v196 = vld [vmem:[%s2 + $0x168] sm:$0xf]
    %v197 = vld [vmem:[%s2 + $0x16c] sm:$0xff]
    %v198 = vld [vmem:[%s2 + $0x174] sm:$0xff]
    %v199 = vld [vmem:[%s2 + $0x17c] sm:$0xff]
    %v200 = vld [vmem:[%s2 + $0x184] sm:$0xf]
    %v201 = vld [vmem:[%s2 + $0x188] sm:$0xff]
    %v202 = vld [vmem:[%s2 + $0x190] sm:$0xff]
    %v203 = vld [vmem:[%s2 + $0x198] sm:$0xff]
    %v204 = vld [vmem:[%s2 + $0x1a0] sm:$0xf]
    %v205 = vld [vmem:[%s2 + $0x1a4] sm:$0xff]
    %v206 = vld [vmem:[%s2 + $0x1ac] sm:$0xff]
    %v207 = vld [vmem:[%s2 + $0x1b4] sm:$0xff]
    %v208 = vld [vmem:[%s2 + $0x1bc] sm:$0xf]
    %v209 = vld [vmem:[%s2 + $0x1c0] sm:$0xff]
    %v210 = vld [vmem:[%s2 + $0x1c8] sm:$0xff]
    %v211 = vld [vmem:[%s2 + $0x1d0] sm:$0xff]
    %v212 = vld [vmem:[%s2 + $0x1d8] sm:$0xf]
    %v213 = vld [vmem:[%s2 + $0x1dc] sm:$0xff]
    %v214 = vld [vmem:[%s2 + $0x1e4] sm:$0xff]
    %v215 = vld [vmem:[%s2 + $0x1ec] sm:$0xff]
    %v216 = vld [vmem:[%s2 + $0x1f4] sm:$0xf]
    %v217 = vld [vmem:[%s2 + $0x1f8] sm:$0xff]
    %v218 = vld [vmem:[%s2 + $0x200] sm:$0xff]
    %v219 = vld [vmem:[%s2 + $0x208] sm:$0xff]
    %v220 = vld [vmem:[%s2 + $0x210] sm:$0xf]
    %v221 = vld [vmem:[%s2 + $0x214] sm:$0xff]
    %v222 = vld [vmem:[%s2 + $0x21c] sm:$0xff]
    %v223 = vld [vmem:[%s2 + $0x224] sm:$0xff]
    %v224 = vld [vmem:[%s2 + $0x22c] sm:$0xf]
    %v225 = vld [vmem:[%s2 + $0x230] sm:$0xff]
    %v226 = vld [vmem:[%s2 + $0x238] sm:$0xff]
    %v227 = vld [vmem:[%s2 + $0x240] sm:$0xff]
    %v228 = vld [vmem:[%s2 + $0x248] sm:$0xf]
    %v229 = vld [vmem:[%s2 + $0x24c] sm:$0xff]
    %v230 = vld [vmem:[%s2 + $0x254] sm:$0xff]
    %v231 = vld [vmem:[%s2 + $0x25c] sm:$0xff]
    %v232 = vld [vmem:[%s2 + $0x264] sm:$0xf]
    %v233 = vld [vmem:[%s2 + $0x268] sm:$0xff]
    %v234 = vld [vmem:[%s2 + $0x270] sm:$0xff]
    %v235 = vld [vmem:[%s2 + $0x278] sm:$0xff]
    %v236 = vld [vmem:[%s2 + $0x280] sm:$0xf]
    %v237 = vld [vmem:[%s2 + $0x284] sm:$0xff]
    %v238 = vld [vmem:[%s2 + $0x28c] sm:$0xff]
    %v239 = vld [vmem:[%s2 + $0x294] sm:$0xff]
    %v240 = vld [vmem:[%s2 + $0x29c] sm:$0xf]
    %v241 = vld [vmem:[%s2 + $0x2a0] sm:$0xff]
    %v242 = vld [vmem:[%s2 + $0x2a8] sm:$0xff]
    %v243 = vld [vmem:[%s2 + $0x2b0] sm:$0xff]
    %v244 = vld [vmem:[%s2 + $0x2b8] sm:$0xf]
    %v245 = vld [vmem:[%s2 + $0x2bc] sm:$0xff]
    %v246 = vld [vmem:[%s2 + $0x2c4] sm:$0xff]
    %v247 = vld [vmem:[%s2 + $0x2cc] sm:$0xff]
    %v248 = vld [vmem:[%s2 + $0x2d4] sm:$0xf]
    %v249 = vld [vmem:[%s2 + $0x2d8] sm:$0xff]
    %v250 = vld [vmem:[%s2 + $0x2e0] sm:$0xff]
    %v251 = vld [vmem:[%s2 + $0x2e8] sm:$0xff]
    %v252 = vld [vmem:[%s2 + $0x2f0] sm:$0xf]
    %v253 = vld [vmem:[%s2 + $0x2f4] sm:$0xff]
    %v254 = vld [vmem:[%s2 + $0x2fc] sm:$0xff]
    %v255 = vld [vmem:[%s2 + $0x304] sm:$0xff]
    %v256 = vld [vmem:[%s2 + $0x30c] sm:$0xf]
    %v257 = vld [vmem:[%s2 + $0x310] sm:$0xff]
    %v258 = vld [vmem:[%s2 + $0x318] sm:$0xff]
    %v259 = vld [vmem:[%s2 + $0x320] sm:$0xff]
    %v260 = vld [vmem:[%s2 + $0x328] sm:$0xf]
    %v261 = vld [vmem:[%s2 + $0x32c] sm:$0xff]
    %v262 = vld [vmem:[%s2 + $0x334] sm:$0xff]
    %v263 = vld [vmem:[%s2 + $0x33c] sm:$0xff]
    %v264 = vld [vmem:[%s2 + $0x344] sm:$0xf]
    %v265 = vld [vmem:[%s2 + $0x348] sm:$0xff]
    %v266 = vld [vmem:[%s2 + $0x350] sm:$0xff]
    %v267 = vld [vmem:[%s2 + $0x358] sm:$0xff]
    %v268 = vld [vmem:[%s2 + $0x360] sm:$0xf]
    %v269 = vld [vmem:[%s2 + $0x364] sm:$0xff]
    %v270 = vld [vmem:[%s2 + $0x36c] sm:$0xff]
    %v271 = vld [vmem:[%s2 + $0x374] sm:$0xff]
    %v272 = vld [vmem:[%s2 + $0x37c] sm:$0xf]
    %v273 = vld [vmem:[%s3] sm:$0x7f]
    %v275 = vperm.slane %v273, 0
    %v276 = vperm.slane %v273, 1
    %v277 = vperm.slane %v273, 2
    %v278 = vperm.slane %v273, 3
    %v279 = vperm.slane %v273, 4
    %v280 = vperm.slane %v273, 5
    %v281 = vperm.slane %v273, 6
    %v417 = vunpack.c.l.b16 %v145
    %v418 = vunpack.c.h.b16 %v145
    %v419 = vunpack.c.l.b16 %v146
    %v420 = vunpack.c.h.b16 %v146
    %v421 = vunpack.c.l.b16 %v147
    %v422 = vunpack.c.h.b16 %v147
    %v423 = vunpack.c.l.b16 %v148
    %v424 = vunpack.c.l.b16 %v149
    %v425 = vunpack.c.h.b16 %v149
    %v426 = vunpack.c.l.b16 %v150
    %v427 = vunpack.c.h.b16 %v150
    %v428 = vunpack.c.l.b16 %v151
    %v429 = vunpack.c.h.b16 %v151
    %v430 = vunpack.c.l.b16 %v152
    %v431 = vunpack.c.l.b16 %v153
    %v432 = vunpack.c.h.b16 %v153
    %v433 = vunpack.c.l.b16 %v154
    %v434 = vunpack.c.h.b16 %v154
    %v435 = vunpack.c.l.b16 %v155
    %v436 = vunpack.c.h.b16 %v155
    %v437 = vunpack.c.l.b16 %v156
    %v438 = vunpack.c.l.b16 %v157
    %v439 = vunpack.c.h.b16 %v157
    %v440 = vunpack.c.l.b16 %v158
    %v441 = vunpack.c.h.b16 %v158
    %v442 = vunpack.c.l.b16 %v159
    %v443 = vunpack.c.h.b16 %v159
    %v444 = vunpack.c.l.b16 %v160
    %v445 = vunpack.c.l.b16 %v161
    %v446 = vunpack.c.h.b16 %v161
    %v447 = vunpack.c.l.b16 %v162
    %v448 = vunpack.c.h.b16 %v162
    %v449 = vunpack.c.l.b16 %v163
    %v450 = vunpack.c.h.b16 %v163
    %v451 = vunpack.c.l.b16 %v164
    %v452 = vunpack.c.l.b16 %v165
    %v453 = vunpack.c.h.b16 %v165
    %v454 = vunpack.c.l.b16 %v166
    %v455 = vunpack.c.h.b16 %v166
    %v456 = vunpack.c.l.b16 %v167
    %v457 = vunpack.c.h.b16 %v167
    %v458 = vunpack.c.l.b16 %v168
    %v459 = vunpack.c.l.b16 %v169
    %v460 = vunpack.c.h.b16 %v169
    %v461 = vunpack.c.l.b16 %v170
    %v462 = vunpack.c.h.b16 %v170
    %v463 = vunpack.c.l.b16 %v171
    %v464 = vunpack.c.h.b16 %v171
    %v465 = vunpack.c.l.b16 %v172
    %v466 = vunpack.c.l.b16 %v173
    %v467 = vunpack.c.h.b16 %v173
    %v468 = vunpack.c.l.b16 %v174
    %v469 = vunpack.c.h.b16 %v174
    %v470 = vunpack.c.l.b16 %v175
    %v471 = vunpack.c.h.b16 %v175
    %v472 = vunpack.c.l.b16 %v176
    %v473 = vunpack.c.l.b16 %v177
    %v474 = vunpack.c.h.b16 %v177
    %v475 = vunpack.c.l.b16 %v178
    %v476 = vunpack.c.h.b16 %v178
    %v477 = vunpack.c.l.b16 %v179
    %v478 = vunpack.c.h.b16 %v179
    %v479 = vunpack.c.l.b16 %v180
    %v480 = vunpack.c.l.b16 %v181
    %v481 = vunpack.c.h.b16 %v181
    %v482 = vunpack.c.l.b16 %v182
    %v483 = vunpack.c.h.b16 %v182
    %v484 = vunpack.c.l.b16 %v183
    %v485 = vunpack.c.h.b16 %v183
    %v486 = vunpack.c.l.b16 %v184
    %v487 = vunpack.c.l.b16 %v185
    %v488 = vunpack.c.h.b16 %v185
    %v489 = vunpack.c.l.b16 %v186
    %v490 = vunpack.c.h.b16 %v186
    %v491 = vunpack.c.l.b16 %v187
    %v492 = vunpack.c.h.b16 %v187
    %v493 = vunpack.c.l.b16 %v188
    %v494 = vunpack.c.l.b16 %v189
    %v495 = vunpack.c.h.b16 %v189
    %v496 = vunpack.c.l.b16 %v190
    %v497 = vunpack.c.h.b16 %v190
    %v498 = vunpack.c.l.b16 %v191
    %v499 = vunpack.c.h.b16 %v191
    %v500 = vunpack.c.l.b16 %v192
    %v501 = vunpack.c.l.b16 %v193
    %v502 = vunpack.c.h.b16 %v193
    %v503 = vunpack.c.l.b16 %v194
    %v504 = vunpack.c.h.b16 %v194
    %v505 = vunpack.c.l.b16 %v195
    %v506 = vunpack.c.h.b16 %v195
    %v507 = vunpack.c.l.b16 %v196
    %v508 = vunpack.c.l.b16 %v197
    %v509 = vunpack.c.h.b16 %v197
    %v510 = vunpack.c.l.b16 %v198
    %v511 = vunpack.c.h.b16 %v198
    %v512 = vunpack.c.l.b16 %v199
    %v513 = vunpack.c.h.b16 %v199
    %v514 = vunpack.c.l.b16 %v200
    %v515 = vunpack.c.l.b16 %v201
    %v516 = vunpack.c.h.b16 %v201
    %v517 = vunpack.c.l.b16 %v202
    %v518 = vunpack.c.h.b16 %v202
    %v519 = vunpack.c.l.b16 %v203
    %v520 = vunpack.c.h.b16 %v203
    %v521 = vunpack.c.l.b16 %v204
    %v522 = vunpack.c.l.b16 %v205
    %v523 = vunpack.c.h.b16 %v205
    %v524 = vunpack.c.l.b16 %v206
    %v525 = vunpack.c.h.b16 %v206
    %v526 = vunpack.c.l.b16 %v207
    %v527 = vunpack.c.h.b16 %v207
    %v528 = vunpack.c.l.b16 %v208
    %v529 = vunpack.c.l.b16 %v209
    %v530 = vunpack.c.h.b16 %v209
    %v531 = vunpack.c.l.b16 %v210
    %v532 = vunpack.c.h.b16 %v210
    %v533 = vunpack.c.l.b16 %v211
    %v534 = vunpack.c.h.b16 %v211
    %v535 = vunpack.c.l.b16 %v212
    %v536 = vunpack.c.l.b16 %v213
    %v537 = vunpack.c.h.b16 %v213
    %v538 = vunpack.c.l.b16 %v214
    %v539 = vunpack.c.h.b16 %v214
    %v540 = vunpack.c.l.b16 %v215
    %v541 = vunpack.c.h.b16 %v215
    %v542 = vunpack.c.l.b16 %v216
    %v543 = vunpack.c.l.b16 %v217
    %v544 = vunpack.c.h.b16 %v217
    %v545 = vunpack.c.l.b16 %v218
    %v546 = vunpack.c.h.b16 %v218
    %v547 = vunpack.c.l.b16 %v219
    %v548 = vunpack.c.h.b16 %v219
    %v549 = vunpack.c.l.b16 %v220
    %v550 = vunpack.c.l.b16 %v221
    %v551 = vunpack.c.h.b16 %v221
    %v552 = vunpack.c.l.b16 %v222
    %v553 = vunpack.c.h.b16 %v222
    %v554 = vunpack.c.l.b16 %v223
    %v555 = vunpack.c.h.b16 %v223
    %v556 = vunpack.c.l.b16 %v224
    %v557 = vunpack.c.l.b16 %v225
    %v558 = vunpack.c.h.b16 %v225
    %v559 = vunpack.c.l.b16 %v226
    %v560 = vunpack.c.h.b16 %v226
    %v561 = vunpack.c.l.b16 %v227
    %v562 = vunpack.c.h.b16 %v227
    %v563 = vunpack.c.l.b16 %v228
    %v564 = vunpack.c.l.b16 %v229
    %v565 = vunpack.c.h.b16 %v229
    %v566 = vunpack.c.l.b16 %v230
    %v567 = vunpack.c.h.b16 %v230
    %v568 = vunpack.c.l.b16 %v231
    %v569 = vunpack.c.h.b16 %v231
    %v570 = vunpack.c.l.b16 %v232
    %v571 = vunpack.c.l.b16 %v233
    %v572 = vunpack.c.h.b16 %v233
    %v573 = vunpack.c.l.b16 %v234
    %v574 = vunpack.c.h.b16 %v234
    %v575 = vunpack.c.l.b16 %v235
    %v576 = vunpack.c.h.b16 %v235
    %v577 = vunpack.c.l.b16 %v236
    %v578 = vunpack.c.l.b16 %v237
    %v579 = vunpack.c.h.b16 %v237
    %v580 = vunpack.c.l.b16 %v238
    %v581 = vunpack.c.h.b16 %v238
    %v582 = vunpack.c.l.b16 %v239
    %v583 = vunpack.c.h.b16 %v239
    %v584 = vunpack.c.l.b16 %v240
    %v585 = vunpack.c.l.b16 %v241
    %v586 = vunpack.c.h.b16 %v241
    %v587 = vunpack.c.l.b16 %v242
    %v588 = vunpack.c.h.b16 %v242
    %v589 = vunpack.c.l.b16 %v243
    %v590 = vunpack.c.h.b16 %v243
    %v591 = vunpack.c.l.b16 %v244
    %v592 = vunpack.c.l.b16 %v245
    %v593 = vunpack.c.h.b16 %v245
    %v594 = vunpack.c.l.b16 %v246
    %v595 = vunpack.c.h.b16 %v246
    %v596 = vunpack.c.l.b16 %v247
    %v597 = vunpack.c.h.b16 %v247
    %v598 = vunpack.c.l.b16 %v248
    %v599 = vunpack.c.l.b16 %v249
    %v600 = vunpack.c.h.b16 %v249
    %v601 = vunpack.c.l.b16 %v250
    %v602 = vunpack.c.h.b16 %v250
    %v603 = vunpack.c.l.b16 %v251
    %v604 = vunpack.c.h.b16 %v251
    %v605 = vunpack.c.l.b16 %v252
    %v606 = vunpack.c.l.b16 %v253
    %v607 = vunpack.c.h.b16 %v253
    %v608 = vunpack.c.l.b16 %v254
    %v609 = vunpack.c.h.b16 %v254
    %v610 = vunpack.c.l.b16 %v255
    %v611 = vunpack.c.h.b16 %v255
    %v612 = vunpack.c.l.b16 %v256
    %v613 = vunpack.c.l.b16 %v257
    %v614 = vunpack.c.h.b16 %v257
    %v615 = vunpack.c.l.b16 %v258
    %v616 = vunpack.c.h.b16 %v258
    %v617 = vunpack.c.l.b16 %v259
    %v618 = vunpack.c.h.b16 %v259
    %v619 = vunpack.c.l.b16 %v260
    %v620 = vunpack.c.l.b16 %v261
    %v621 = vunpack.c.h.b16 %v261
    %v622 = vunpack.c.l.b16 %v262
    %v623 = vunpack.c.h.b16 %v262
    %v624 = vunpack.c.l.b16 %v263
    %v625 = vunpack.c.h.b16 %v263
    %v626 = vunpack.c.l.b16 %v264
    %v627 = vunpack.c.l.b16 %v265
    %v628 = vunpack.c.h.b16 %v265
    %v629 = vunpack.c.l.b16 %v266
    %v630 = vunpack.c.h.b16 %v266
    %v631 = vunpack.c.l.b16 %v267
    %v632 = vunpack.c.h.b16 %v267
    %v633 = vunpack.c.l.b16 %v268
    %v634 = vunpack.c.l.b16 %v269
    %v635 = vunpack.c.h.b16 %v269
    %v636 = vunpack.c.l.b16 %v270
    %v637 = vunpack.c.h.b16 %v270
    %v638 = vunpack.c.l.b16 %v271
    %v639 = vunpack.c.h.b16 %v271
    %v640 = vunpack.c.l.b16 %v272
    %v641 = vpack.c.b16 %v424, %v417
    %v642 = vpack.c.b16 %v425, %v418
    %v643 = vpack.c.b16 %v426, %v419
    %v644 = vpack.c.b16 %v427, %v420
    %v645 = vpack.c.b16 %v428, %v421
    %v646 = vpack.c.b16 %v429, %v422
    %v647 = vpack.c.b16 %v430, %v423
    %v648 = vpack.c.b16 %v438, %v431
    %v649 = vpack.c.b16 %v439, %v432
    %v650 = vpack.c.b16 %v440, %v433
    %v651 = vpack.c.b16 %v441, %v434
    %v652 = vpack.c.b16 %v442, %v435
    %v653 = vpack.c.b16 %v443, %v436
    %v654 = vpack.c.b16 %v444, %v437
    %v655 = vpack.c.b16 %v452, %v445
    %v656 = vpack.c.b16 %v453, %v446
    %v657 = vpack.c.b16 %v454, %v447
    %v658 = vpack.c.b16 %v455, %v448
    %v659 = vpack.c.b16 %v456, %v449
    %v660 = vpack.c.b16 %v457, %v450
    %v661 = vpack.c.b16 %v458, %v451
    %v662 = vpack.c.b16 %v466, %v459
    %v663 = vpack.c.b16 %v467, %v460
    %v664 = vpack.c.b16 %v468, %v461
    %v665 = vpack.c.b16 %v469, %v462
    %v666 = vpack.c.b16 %v470, %v463
    %v667 = vpack.c.b16 %v471, %v464
    %v668 = vpack.c.b16 %v472, %v465
    %v669 = vpack.c.b16 %v480, %v473
    %v670 = vpack.c.b16 %v481, %v474
    %v671 = vpack.c.b16 %v482, %v475
    %v672 = vpack.c.b16 %v483, %v476
    %v673 = vpack.c.b16 %v484, %v477
    %v674 = vpack.c.b16 %v485, %v478
    %v675 = vpack.c.b16 %v486, %v479
    %v676 = vpack.c.b16 %v494, %v487
    %v677 = vpack.c.b16 %v495, %v488
    %v678 = vpack.c.b16 %v496, %v489
    %v679 = vpack.c.b16 %v497, %v490
    %v680 = vpack.c.b16 %v498, %v491
    %v681 = vpack.c.b16 %v499, %v492
    %v682 = vpack.c.b16 %v500, %v493
    %v683 = vpack.c.b16 %v508, %v501
    %v684 = vpack.c.b16 %v509, %v502
    %v685 = vpack.c.b16 %v510, %v503
    %v686 = vpack.c.b16 %v511, %v504
    %v687 = vpack.c.b16 %v512, %v505
    %v688 = vpack.c.b16 %v513, %v506
    %v689 = vpack.c.b16 %v514, %v507
    %v690 = vpack.c.b16 %v522, %v515
    %v691 = vpack.c.b16 %v523, %v516
    %v692 = vpack.c.b16 %v524, %v517
    %v693 = vpack.c.b16 %v525, %v518
    %v694 = vpack.c.b16 %v526, %v519
    %v695 = vpack.c.b16 %v527, %v520
    %v696 = vpack.c.b16 %v528, %v521
    %v697 = vpack.c.b16 %v536, %v529
    %v698 = vpack.c.b16 %v537, %v530
    %v699 = vpack.c.b16 %v538, %v531
    %v700 = vpack.c.b16 %v539, %v532
    %v701 = vpack.c.b16 %v540, %v533
    %v702 = vpack.c.b16 %v541, %v534
    %v703 = vpack.c.b16 %v542, %v535
    %v704 = vpack.c.b16 %v550, %v543
    %v705 = vpack.c.b16 %v551, %v544
    %v706 = vpack.c.b16 %v552, %v545
    %v707 = vpack.c.b16 %v553, %v546
    %v708 = vpack.c.b16 %v554, %v547
    %v709 = vpack.c.b16 %v555, %v548
    %v710 = vpack.c.b16 %v556, %v549
    %v711 = vpack.c.b16 %v564, %v557
    %v712 = vpack.c.b16 %v565, %v558
    %v713 = vpack.c.b16 %v566, %v559
    %v714 = vpack.c.b16 %v567, %v560
    %v715 = vpack.c.b16 %v568, %v561
    %v716 = vpack.c.b16 %v569, %v562
    %v717 = vpack.c.b16 %v570, %v563
    %v718 = vpack.c.b16 %v578, %v571
    %v719 = vpack.c.b16 %v579, %v572
    %v720 = vpack.c.b16 %v580, %v573
    %v721 = vpack.c.b16 %v581, %v574
    %v722 = vpack.c.b16 %v582, %v575
    %v723 = vpack.c.b16 %v583, %v576
    %v724 = vpack.c.b16 %v584, %v577
    %v725 = vpack.c.b16 %v592, %v585
    %v726 = vpack.c.b16 %v593, %v586
    %v727 = vpack.c.b16 %v594, %v587
    %v728 = vpack.c.b16 %v595, %v588
    %v729 = vpack.c.b16 %v596, %v589
    %v730 = vpack.c.b16 %v597, %v590
    %v731 = vpack.c.b16 %v598, %v591
    %v732 = vpack.c.b16 %v606, %v599
    %v733 = vpack.c.b16 %v607, %v600
    %v734 = vpack.c.b16 %v608, %v601
    %v735 = vpack.c.b16 %v609, %v602
    %v736 = vpack.c.b16 %v610, %v603
    %v737 = vpack.c.b16 %v611, %v604
    %v738 = vpack.c.b16 %v612, %v605
    %v739 = vpack.c.b16 %v620, %v613
    %v740 = vpack.c.b16 %v621, %v614
    %v741 = vpack.c.b16 %v622, %v615
    %v742 = vpack.c.b16 %v623, %v616
    %v743 = vpack.c.b16 %v624, %v617
    %v744 = vpack.c.b16 %v625, %v618
    %v745 = vpack.c.b16 %v626, %v619
    %v746 = vpack.c.b16 %v634, %v627
    %v747 = vpack.c.b16 %v635, %v628
    %v748 = vpack.c.b16 %v636, %v629
    %v749 = vpack.c.b16 %v637, %v630
    %v750 = vpack.c.b16 %v638, %v631
    %v751 = vpack.c.b16 %v639, %v632
    %v752 = vpack.c.b16 %v640, %v633
    %865 = vmatpush.bf16.msra.mxu0 %v690
    %866 = vmatpush.bf16.msra.mxu0 %v683
    %867 = vmatpush.bf16.msra.mxu0 %v676
    %868 = vmatpush.bf16.msra.mxu0 %v669
    %869 = vmatpush.bf16.msra.mxu0 %v662
    %870 = vmatpush.bf16.msra.mxu0 %v655
    %871 = vmatpush.bf16.msra.mxu0 %v648
    %872 = vmatpush.bf16.msra.mxu0 %v641
    %873 = vmatmul.bf16.gmra.mxu0 %v143
    %v874 = vpop.f32.mrf.mxu0
    %v875 = vadd.f32 %v275, %v874
    %v876 = vpop.f32.mrf.mxu0
    %877 = vdwg.mxu0
    %878 = vmatpush.bf16.msra.mxu0 %v746
    %879 = vmatpush.bf16.msra.mxu0 %v739
    %880 = vmatpush.bf16.msra.mxu0 %v732
    %881 = vmatpush.bf16.msra.mxu0 %v725
    %882 = vmatpush.bf16.msra.mxu0 %v718
    %883 = vmatpush.bf16.msra.mxu0 %v711
    %884 = vmatpush.bf16.msra.mxu0 %v704
    %885 = vmatpush.bf16.msra.mxu0 %v697
    %886 = vmatmul.bf16.gmra.mxu0 %v144
    %v887 = vpop.f32.mrf.mxu0
    %v888 = vadd.f32 %v875, %v887
    %v889 = vpop.f32.mrf.mxu0
    %890 = vdwg.mxu0
    %891 = vmatpush.bf16.msra.mxu0 %v691
    %892 = vmatpush.bf16.msra.mxu0 %v684
    %893 = vmatpush.bf16.msra.mxu0 %v677
    %894 = vmatpush.bf16.msra.mxu0 %v670
    %895 = vmatpush.bf16.msra.mxu0 %v663
    %896 = vmatpush.bf16.msra.mxu0 %v656
    %897 = vmatpush.bf16.msra.mxu0 %v649
    %898 = vmatpush.bf16.msra.mxu0 %v642
    %899 = vmatmul.bf16.gmra.mxu0 %v143
    %v900 = vpop.f32.mrf.mxu0
    %v901 = vadd.f32 %v276, %v900
    %v902 = vpop.f32.mrf.mxu0
    %903 = vdwg.mxu0
    %904 = vmatpush.bf16.msra.mxu0 %v747
    %905 = vmatpush.bf16.msra.mxu0 %v740
    %906 = vmatpush.bf16.msra.mxu0 %v733
    %907 = vmatpush.bf16.msra.mxu0 %v726
    %908 = vmatpush.bf16.msra.mxu0 %v719
    %909 = vmatpush.bf16.msra.mxu0 %v712
    %910 = vmatpush.bf16.msra.mxu0 %v705
    %911 = vmatpush.bf16.msra.mxu0 %v698
    %912 = vmatmul.bf16.gmra.mxu0 %v144
    %v913 = vpop.f32.mrf.mxu0
    %v914 = vadd.f32 %v901, %v913
    %v915 = vpop.f32.mrf.mxu0
    %916 = vdwg.mxu0
    %917 = vmatpush.bf16.msra.mxu0 %v692
    %918 = vmatpush.bf16.msra.mxu0 %v685
    %919 = vmatpush.bf16.msra.mxu0 %v678
    %920 = vmatpush.bf16.msra.mxu0 %v671
    %921 = vmatpush.bf16.msra.mxu0 %v664
    %922 = vmatpush.bf16.msra.mxu0 %v657
    %923 = vmatpush.bf16.msra.mxu0 %v650
    %924 = vmatpush.bf16.msra.mxu0 %v643
    %925 = vmatmul.bf16.gmra.mxu0 %v143
    %v926 = vpop.f32.mrf.mxu0
    %v927 = vadd.f32 %v277, %v926
    %v928 = vpop.f32.mrf.mxu0
    %929 = vdwg.mxu0
    %930 = vmatpush.bf16.msra.mxu0 %v748
    %931 = vmatpush.bf16.msra.mxu0 %v741
    %932 = vmatpush.bf16.msra.mxu0 %v734
    %933 = vmatpush.bf16.msra.mxu0 %v727
    %934 = vmatpush.bf16.msra.mxu0 %v720
    %935 = vmatpush.bf16.msra.mxu0 %v713
    %936 = vmatpush.bf16.msra.mxu0 %v706
    %937 = vmatpush.bf16.msra.mxu0 %v699
    %938 = vmatmul.bf16.gmra.mxu0 %v144
    %v939 = vpop.f32.mrf.mxu0
    %v940 = vadd.f32 %v927, %v939
    %v941 = vpop.f32.mrf.mxu0
    %942 = vdwg.mxu0
    %943 = vmatpush.bf16.msra.mxu0 %v693
    %944 = vmatpush.bf16.msra.mxu0 %v686
    %945 = vmatpush.bf16.msra.mxu0 %v679
    %946 = vmatpush.bf16.msra.mxu0 %v672
    %947 = vmatpush.bf16.msra.mxu0 %v665
    %948 = vmatpush.bf16.msra.mxu0 %v658
    %949 = vmatpush.bf16.msra.mxu0 %v651
    %950 = vmatpush.bf16.msra.mxu0 %v644
    %951 = vmatmul.bf16.gmra.mxu0 %v143
    %v952 = vpop.f32.mrf.mxu0
    %v953 = vadd.f32 %v278, %v952
    %v954 = vpop.f32.mrf.mxu0
    %955 = vdwg.mxu0
    %956 = vmatpush.bf16.msra.mxu0 %v749
    %957 = vmatpush.bf16.msra.mxu0 %v742
    %958 = vmatpush.bf16.msra.mxu0 %v735
    %959 = vmatpush.bf16.msra.mxu0 %v728
    %960 = vmatpush.bf16.msra.mxu0 %v721
    %961 = vmatpush.bf16.msra.mxu0 %v714
    %962 = vmatpush.bf16.msra.mxu0 %v707
    %963 = vmatpush.bf16.msra.mxu0 %v700
    %964 = vmatmul.bf16.gmra.mxu0 %v144
    %v965 = vpop.f32.mrf.mxu0
    %v966 = vadd.f32 %v953, %v965
    %v967 = vpop.f32.mrf.mxu0
    %968 = vdwg.mxu0
    %969 = vmatpush.bf16.msra.mxu0 %v694
    %970 = vmatpush.bf16.msra.mxu0 %v687
    %971 = vmatpush.bf16.msra.mxu0 %v680
    %972 = vmatpush.bf16.msra.mxu0 %v673
    %973 = vmatpush.bf16.msra.mxu0 %v666
    %974 = vmatpush.bf16.msra.mxu0 %v659
    %975 = vmatpush.bf16.msra.mxu0 %v652
    %976 = vmatpush.bf16.msra.mxu0 %v645
    %977 = vmatmul.bf16.gmra.mxu0 %v143
    %v978 = vpop.f32.mrf.mxu0
    %v979 = vadd.f32 %v279, %v978
    %v980 = vpop.f32.mrf.mxu0
    %981 = vdwg.mxu0
    %982 = vmatpush.bf16.msra.mxu0 %v750
    %983 = vmatpush.bf16.msra.mxu0 %v743
    %984 = vmatpush.bf16.msra.mxu0 %v736
    %985 = vmatpush.bf16.msra.mxu0 %v729
    %986 = vmatpush.bf16.msra.mxu0 %v722
    %987 = vmatpush.bf16.msra.mxu0 %v715
    %988 = vmatpush.bf16.msra.mxu0 %v708
    %989 = vmatpush.bf16.msra.mxu0 %v701
    %990 = vmatmul.bf16.gmra.mxu0 %v144
    %v991 = vpop.f32.mrf.mxu0
    %v992 = vadd.f32 %v979, %v991
    %v993 = vpop.f32.mrf.mxu0
    %994 = vdwg.mxu0
    %995 = vmatpush.bf16.msra.mxu0 %v695
    %996 = vmatpush.bf16.msra.mxu0 %v688
    %997 = vmatpush.bf16.msra.mxu0 %v681
    %998 = vmatpush.bf16.msra.mxu0 %v674
    %999 = vmatpush.bf16.msra.mxu0 %v667
    %1000 = vmatpush.bf16.msra.mxu0 %v660
    %1001 = vmatpush.bf16.msra.mxu0 %v653
    %1002 = vmatpush.bf16.msra.mxu0 %v646
    %1003 = vmatmul.bf16.gmra.mxu0 %v143
    %v1004 = vpop.f32.mrf.mxu0
    %v1005 = vadd.f32 %v280, %v1004
    %v1006 = vpop.f32.mrf.mxu0
    %1007 = vdwg.mxu0
    %1008 = vmatpush.bf16.msra.mxu0 %v751
    %1009 = vmatpush.bf16.msra.mxu0 %v744
    %1010 = vmatpush.bf16.msra.mxu0 %v737
    %1011 = vmatpush.bf16.msra.mxu0 %v730
    %1012 = vmatpush.bf16.msra.mxu0 %v723
    %1013 = vmatpush.bf16.msra.mxu0 %v716
    %1014 = vmatpush.bf16.msra.mxu0 %v709
    %1015 = vmatpush.bf16.msra.mxu0 %v702
    %1016 = vmatmul.bf16.gmra.mxu0 %v144
    %v1017 = vpop.f32.mrf.mxu0
    %v1018 = vadd.f32 %v1005, %v1017
    %v1019 = vpop.f32.mrf.mxu0
    %1020 = vdwg.mxu0
    %1021 = vmatpush.bf16.msra.mxu0 %v696
    %1022 = vmatpush.bf16.msra.mxu0 %v689
    %1023 = vmatpush.bf16.msra.mxu0 %v682
    %1024 = vmatpush.bf16.msra.mxu0 %v675
    %1025 = vmatpush.bf16.msra.mxu0 %v668
    %1026 = vmatpush.bf16.msra.mxu0 %v661
    %1027 = vmatpush.bf16.msra.mxu0 %v654
    %1028 = vmatpush.bf16.msra.mxu0 %v647
    %1029 = vmatmul.bf16.gmra.mxu0 %v143
    %v1030 = vpop.f32.mrf.mxu0
    %v1031 = vadd.f32 %v281, %v1030
    %v1032 = vpop.f32.mrf.mxu0
    %1033 = vdwg.mxu0
    %1034 = vmatpush.bf16.msra.mxu0 %v752
    %1035 = vmatpush.bf16.msra.mxu0 %v745
    %1036 = vmatpush.bf16.msra.mxu0 %v738
    %1037 = vmatpush.bf16.msra.mxu0 %v731
    %1038 = vmatpush.bf16.msra.mxu0 %v724
    %1039 = vmatpush.bf16.msra.mxu0 %v717
    %1040 = vmatpush.bf16.msra.mxu0 %v710
    %1041 = vmatpush.bf16.msra.mxu0 %v703
    %1042 = vmatmul.bf16.gmra.mxu0 %v144
    %v1043 = vpop.f32.mrf.mxu0
    %v1044 = vadd.f32 %v1031, %v1043
    %v1045 = vpop.f32.mrf.mxu0
    %1046 = vdwg.mxu0
    %v1047 = vtanh.pop %v888
    %v1048 = vtanh.pop %v914
    %v1049 = vtanh.pop %v940
    %v1050 = vtanh.pop %v966
    %v1051 = vtanh.pop %v992
    %v1052 = vtanh.pop %v1018
    %v1053 = vtanh.pop %v1044
    %v1054 = vpack.c.bf16 %v1048, %v1047
    %v1055 = vpack.c.bf16 %v1050, %v1049
    %v1056 = vpack.c.bf16 %v1052, %v1051
    %v1057 = vpack.c.bf16 %v1053, %v1053
    %1058 = vst [vmem:[#allocation2] sm:$0xff] %v1054
    %1059 = vst [vmem:[#allocation2 + $0x8] sm:$0xff] %v1055
    %1060 = vst [vmem:[#allocation2 + $0x10] sm:$0xff] %v1056
    %vm1061 = vcmask 125952
    %1062 = vst.msk [vmem:[#allocation2 + $0x18] sm:$0xf] %vm1061, %v1057
    // Predicated region
    $region18: #{tpu_custom_call.1} parent=1 // pred_check
      _
    $region19: #{tpu_custom_call.1} parent=1 // pred_check_branch
      %1064 = sbr.rel (0) target = $region21
    $region20: #{tpu_custom_call.1} parent=1 // pred_region
      %1066 = vsyncadd [#allocation3], 0
      %s1068 = sshll.u32 [#allocation2], 4
      %s1069 = int_to_ptr.vmem [resolvable:$true] %s1068
      %s1070 = sshll.u32 %s4, 4
      %s1071 = int_to_ptr.hbm [resolvable:$true] %s1070
      %1073 = dma.vmem_to_hbm [thread:$0]  %s1069, 448, %s1071, [#allocation3]
    $region21: #{tpu_custom_call.1} parent=1 // pred_fallthru
      _
    // Predicated region
    $region22: #{tpu_custom_call.1} parent=1 // pred_check
      _
    $region23: #{tpu_custom_call.1} parent=1 // pred_check_branch
      %1075 = sbr.rel (0) target = $region25
    $region24: #{tpu_custom_call.1} parent=1 // pred_region
      %1077 = dma.done [#allocation3], 448
    $region25: #{tpu_custom_call.1} parent=1 // pred_fallthru
      _
    %1078 = vsyncpa [#allocation3], 1

</llo_original>
